<compile_context>
chip_gen: v7x
topology: tpu7x:2x2x1
jax: 0.10.0
libtpu: 0.0.40
codegen_flags: <defaults>
</compile_context>

<pallas_src>
import jax
import jax.numpy as jnp
from jax.experimental import pallas as pl
from jax.experimental.pallas import tpu as pltpu


# Per-step VMEM footprint is ~128 * TT bytes (x tile 2x32*TT + out tile 2x32*TT,
# both padded to 8 sublanes).  98304 (= 768 * 128) keeps that ~12.6 MiB, under
# the default scoped-VMEM limit on every TPU generation (incl. v5e's 16 MiB).
_MAX_TIME_TILE = 98_304


def combined_kernel(x_ref, w_ref, b_ref, out_ref):
    """One (batch, time-tile) step of the folded embedding∘pred linear.

    x_ref  : (1, F, TT)  time-lane-dense input tile
    w_ref  : (K, F)      folded weight (W_emb @ W_pred)^T, VMEM-resident
    b_ref  : (K, 1)      folded bias   W_pred^T @ b_emb + b_pred, resident
    out_ref: (1, K, TT)  channel-major logits tile (time stays lane-dense)
    """
    x = x_ref[0]           # (F, TT)
    w = w_ref[...]         # (K, F)
    n_feat = x.shape[0]    # static (F = 4)

    # Tiny contraction (F=4): lower as F broadcast-FMAs on the VPU — exact f32,
    # no MXU tile padding.  The kernel is HBM-bound, so VALU slack is free.
    acc = w[:, 0:1] * x[0:1, :] + b_ref[...]            # (K, TT)
    for f in range(1, n_feat):                          # unrolled at trace time
        acc = acc + w[:, f:f + 1] * x[f:f + 1, :]
    out_ref[0] = acc.astype(out_ref.dtype)


def _pick_time_tile(t_padded, target, min_steps=4):
    """Largest 128-multiple TT dividing t_padded, <= target and <= _MAX_TIME_TILE,
    keeping at least `min_steps` time steps when possible (for pipelining and
    v7x dual-TensorCore sharding)."""
    target = min(int(target), _MAX_TIME_TILE)
    max_for_steps = max(128, (t_padded // min_steps) // 128 * 128)
    tt = min(target, max_for_steps, t_padded)
    tt = max(128, (tt // 128) * 128)
    while t_padded % tt != 0:
        tt -= 128
    return tt


def combined_forward(x, w_emb, b_emb, w_pred, b_pred, overlap_interval,
                     time_tile=65_536, out_dtype=jnp.float32):
    """Pallas implementation of Combined.forward (labels=None path).

    x: (B, F, T) float32.  Returns {'logits': (B, T - 2*overlap_interval, K)}.
    Set out_dtype=jnp.bfloat16 to halve output-write + transpose HBM traffic
    if downstream tolerates bf16 logits.
    """
    B, F, T = x.shape
    K = w_pred.shape[1]
    t_orig = T

    # Pad time up to a multiple of 128; the padded tail is dropped by the crop.
    if T % 128 != 0:
        pad = (-T) % 128
        x = jnp.pad(x, ((0, 0), (0, 0), (0, pad)))
        T = T + pad

    TT = _pick_time_tile(T, time_tile)
    nT = T // TT

    # One-time tiny fold of the two linears (valid while the encoder is
    # identity).  HIGHEST precision keeps the D=32 contraction at ~f32.
    hi = jax.lax.Precision.HIGHEST
    w_comb_t = jnp.transpose(jnp.dot(w_emb, w_pred, precision=hi))       # (K, F)
    b_comb = (jnp.dot(b_emb, w_pred, precision=hi) + b_pred).reshape(K, 1)

    out_itemsize = jnp.dtype(out_dtype).itemsize
    cost = pl.CostEstimate(
        flops=2 * B * T * F * K,
        transcendentals=0,
        bytes_accessed=4 * B * F * T + out_itemsize * B * K * T + 4 * (K * F + K),
    )

    out = pl.pallas_call(
        combined_kernel,
        out_shape=jax.ShapeDtypeStruct((B, K, T), out_dtype),
        grid_spec=pl.GridSpec(
            grid=(B, nT),
            in_specs=[
                pl.BlockSpec((1, F, TT), lambda b, t: (b, 0, t)),
                pl.BlockSpec((K, F), lambda b, t: (0, 0)),   # resident weight
                pl.BlockSpec((K, 1), lambda b, t: (0, 0)),   # resident bias
            ],
            out_specs=pl.BlockSpec((1, K, TT), lambda b, t: (b, 0, t)),
        ),
        compiler_params=pltpu.CompilerParams(
            dimension_semantics=("parallel", "parallel")),
        cost_estimate=cost,
    )(x, w_comb_t, b_comb)

    # Overlap crop + restore PyTorch (B, T_out, K) layout in one fused XLA
    # slice+transpose on the (small) logits tensor.
    logits = jnp.transpose(
        out[:, :, overlap_interval:t_orig - overlap_interval], (0, 2, 1))
    return {"logits": logits}


def _reference_forward(x, w_emb, b_emb, w_pred, b_pred, overlap_interval):
    """Pure-JAX reference mirroring the PyTorch forward (labels=None path)."""
    hi = jax.lax.Precision.HIGHEST
    h = jnp.einsum("bft,fd->btd", x, w_emb, precision=hi) + b_emb  # permute+emb
    # encoder identity; decoder output discarded by the reference forward
    logits = jnp.einsum("btd,dk->btk", h, w_pred, precision=hi) + b_pred
    T = x.shape[2]
    return logits[:, overlap_interval:T - overlap_interval, :]


if __name__ == "__main__":
    # small, module-consistent shapes
    B = 2            # batch
    F = 4            # len(cfg.features)  (input channels)
    T = 512          # sequence length (time)
    D = 32           # cfg.encoder.input_dimension (only used by the fold)
    K = 6            # cfg.num_classes
    OVERLAP = 32     # cfg.overlap_interval

    key = jax.random.PRNGKey(0)
    kx, ke, kbe, kp, kbp = jax.random.split(key, 5)

    x = jax.random.normal(kx, (B, F, T), dtype=jnp.float32)
    w_emb = jax.random.normal(ke, (F, D), dtype=jnp.float32) * 0.1
    b_emb = jax.random.normal(kbe, (D,), dtype=jnp.float32) * 0.1
    w_pred = jax.random.normal(kp, (D, K), dtype=jnp.float32) * 0.1
    b_pred = jax.random.normal(kbp, (K,), dtype=jnp.float32) * 0.1

    # small time_tile so the demo exercises a real multi-step grid (2 x 4)
    out = combined_forward(x, w_emb, b_emb, w_pred, b_pred, OVERLAP,
                           time_tile=128)
    logits = jax.block_until_ready(out["logits"])

    ref = _reference_forward(x, w_emb, b_emb, w_pred, b_pred, OVERLAP)
    assert logits.shape == (B, T - 2 * OVERLAP, K), logits.shape
    assert jnp.allclose(logits, ref, atol=1e-4, rtol=1e-4), "mismatch vs reference"

    print("KERNEL_OK")
</pallas_src>

<mosaic_0001>
module attributes {stable_mosaic.version = 11 : i64} {
  func.func @combined_kernel(%arg0: i32, %arg1: i32, %arg2: memref<1x4x128xf32, #tpu.memory_space<vmem>>, %arg3: memref<6x4xf32, #tpu.memory_space<vmem>>, %arg4: memref<6x1xf32, #tpu.memory_space<vmem>>, %arg5: memref<1x6x128xf32, #tpu.memory_space<vmem>>) attributes {dimension_semantics = [#tpu.dimension_semantics<parallel>, #tpu.dimension_semantics<parallel>], iteration_bounds = array<i64: 2, 4>, scalar_prefetch = 0 : i64, scratch_operands = 0 : i64, tpu.core_type = #tpu.core_type<tc>, window_params = [{transform_indices = @transform_0, window_bounds = array<i64: 1, 4, 128>}, {pipeline_mode = #tpu.pipeline_mode<synchronous>, transform_indices = @transform_1, window_bounds = array<i64: 6, 4>}, {pipeline_mode = #tpu.pipeline_mode<synchronous>, transform_indices = @transform_2, window_bounds = array<i64: 6, 1>}, {transform_indices = @transform_3, window_bounds = array<i64: 1, 6, 128>}]} {
    %c0 = arith.constant 0 : index
    %c0_0 = arith.constant 0 : index
    %c0_1 = arith.constant 0 : index
    %0 = vector.load %arg2[%c0, %c0_0, %c0_1] : memref<1x4x128xf32, #tpu.memory_space<vmem>>, vector<1x4x128xf32>
    %1 = vector.shape_cast %0 : vector<1x4x128xf32> to vector<4x128xf32>
    %c0_2 = arith.constant 0 : index
    %c0_3 = arith.constant 0 : index
    %2 = vector.load %arg3[%c0_2, %c0_3] : memref<6x4xf32, #tpu.memory_space<vmem>>, vector<6x4xf32>
    %3 = vector.extract_strided_slice %2 {offsets = [0, 0], sizes = [6, 1], strides = [1, 1]} : vector<6x4xf32> to vector<6x1xf32>
    %4 = vector.extract_strided_slice %1 {offsets = [0, 0], sizes = [1, 128], strides = [1, 1]} : vector<4x128xf32> to vector<1x128xf32>
    %5 = vector.broadcast %3 : vector<6x1xf32> to vector<6x128xf32>
    %6 = vector.broadcast %4 : vector<1x128xf32> to vector<6x128xf32>
    %7 = arith.mulf %5, %6 : vector<6x128xf32>
    %c0_4 = arith.constant 0 : index
    %c0_5 = arith.constant 0 : index
    %8 = vector.load %arg4[%c0_4, %c0_5] : memref<6x1xf32, #tpu.memory_space<vmem>>, vector<6x1xf32>
    %9 = vector.broadcast %8 : vector<6x1xf32> to vector<6x128xf32>
    %10 = arith.addf %7, %9 : vector<6x128xf32>
    %11 = vector.extract_strided_slice %2 {offsets = [0, 1], sizes = [6, 1], strides = [1, 1]} : vector<6x4xf32> to vector<6x1xf32>
    %12 = vector.extract_strided_slice %1 {offsets = [1, 0], sizes = [1, 128], strides = [1, 1]} : vector<4x128xf32> to vector<1x128xf32>
    %13 = vector.broadcast %11 : vector<6x1xf32> to vector<6x128xf32>
    %14 = vector.broadcast %12 : vector<1x128xf32> to vector<6x128xf32>
    %15 = arith.mulf %13, %14 : vector<6x128xf32>
    %16 = arith.addf %10, %15 : vector<6x128xf32>
    %17 = vector.extract_strided_slice %2 {offsets = [0, 2], sizes = [6, 1], strides = [1, 1]} : vector<6x4xf32> to vector<6x1xf32>
    %18 = vector.extract_strided_slice %1 {offsets = [2, 0], sizes = [1, 128], strides = [1, 1]} : vector<4x128xf32> to vector<1x128xf32>
    %19 = vector.broadcast %17 : vector<6x1xf32> to vector<6x128xf32>
    %20 = vector.broadcast %18 : vector<1x128xf32> to vector<6x128xf32>
    %21 = arith.mulf %19, %20 : vector<6x128xf32>
    %22 = arith.addf %16, %21 : vector<6x128xf32>
    %23 = vector.extract_strided_slice %2 {offsets = [0, 3], sizes = [6, 1], strides = [1, 1]} : vector<6x4xf32> to vector<6x1xf32>
    %24 = vector.extract_strided_slice %1 {offsets = [3, 0], sizes = [1, 128], strides = [1, 1]} : vector<4x128xf32> to vector<1x128xf32>
    %25 = vector.broadcast %23 : vector<6x1xf32> to vector<6x128xf32>
    %26 = vector.broadcast %24 : vector<1x128xf32> to vector<6x128xf32>
    %27 = arith.mulf %25, %26 : vector<6x128xf32>
    %28 = arith.addf %22, %27 : vector<6x128xf32>
    %c0_6 = arith.constant 0 : index
    %c0_7 = arith.constant 0 : index
    %c0_8 = arith.constant 0 : index
    %29 = vector.load %arg5[%c0_6, %c0_7, %c0_8] : memref<1x6x128xf32, #tpu.memory_space<vmem>>, vector<1x6x128xf32>
    %30 = vector.shape_cast %29 : vector<1x6x128xf32> to vector<6x128xf32>
    %31 = vector.shape_cast %28 : vector<6x128xf32> to vector<1x6x128xf32>
    tpu.vector_store %arg5[%c0_6, %c0_7, %c0_8], %31 {strides = array<i32>} : memref<1x6x128xf32, #tpu.memory_space<vmem>>, vector<1x6x128xf32>,
    return
  }
  func.func @transform_0(%arg0: i32, %arg1: i32) -> (i32, i32, i32) {
    %c0_i32 = arith.constant 0 : i32
    %c0_i32_0 = arith.constant 0 : i32
    return %arg0, %c0_i32, %arg1 : i32, i32, i32
  }
  func.func @transform_1(%arg0: i32, %arg1: i32) -> (i32, i32) {
    %c0_i32 = arith.constant 0 : i32
    %c0_i32_0 = arith.constant 0 : i32
    %c0_i32_1 = arith.constant 0 : i32
    return %c0_i32, %c0_i32_0 : i32, i32
  }
  func.func @transform_2(%arg0: i32, %arg1: i32) -> (i32, i32) {
    %c0_i32 = arith.constant 0 : i32
    %c0_i32_0 = arith.constant 0 : i32
    %c0_i32_1 = arith.constant 0 : i32
    return %c0_i32, %c0_i32_0 : i32, i32
  }
  func.func @transform_3(%arg0: i32, %arg1: i32) -> (i32, i32, i32) {
    %c0_i32 = arith.constant 0 : i32
    %c0_i32_0 = arith.constant 0 : i32
    return %arg0, %c0_i32, %arg1 : i32, i32, i32
  }
}

</mosaic_0001>

<llo_original>
// kernel: tpu_custom_call.1
$region0: #{tpu_custom_call.1}
  #allocation0 [shape = 'u32[]', space=smem, size = 0x4, offset = 0x4, fixed_abs, tag = 'smem constant byte address 0x4 - core index']
  #allocation1 [shape = 'u32[144,128]{1,0:T(1,128)}', space=vmem, size = 0x12000, scoped, tag = 'internal scratch']
  %s0 = inlined_call_operand.hbm [shape: f32[2,4,512], index: 0, kind: input, shape index: {}]
  %s1 = inlined_call_operand.vmem [shape: f32[6,4], index: 1, kind: input, shape index: {}]
  %s2 = inlined_call_operand.vmem [shape: f32[6,1], index: 2, kind: input, shape index: {}]
  %s3 = inlined_call_operand.vmem [shape: f32[2,6,512], index: 3, kind: output, shape index: {}]
  %s4 = sld [smem:[#allocation0]]
  $region49: #{tpu_custom_call.1} parent=0
    _
  %s6 = ssub.s32 1, %s4
  %s7 = scalar_select 0, %s6, %s4
  $region1: #{tpu_custom_call.1} parent=0
    #allocation2 [shape = 'u8[4096]{0}', space=vmem, size = 0x1000, scoped, tag = 'input window, operand 0']
    #allocation3 [shape = 's32[2]{0}', space=sflag, size = 0x8, scoped, tag = 'scoped memory for tpu_custom_call.1']
    %8 = vsyncpa [#allocation3], 0
    %s9 = scalar_lea.sflag [#allocation3], 1
    %10 = vsyncpa %s9, 0
    loop: start=0, step=1, limit=10
    $region2: #{tpu_custom_call.1} parent=1 // loop_pre_header
      _
    $region3: #{tpu_custom_call.1} parent=1 // loop_header
      %s12 = sphi 0, %s16
      %p13 = scmp.ge.s32.totalorder %s12, 10
      %s19 = sphi 0, %s31
      %s20 = sphi 0, %s27
      %s21 = sphi 0, %s19
      %s22 = sphi 0, %s20
      %s23 = sphi 0, %s21
      %s24 = sphi 0, %s22
      %s36 = sphi 0, %s38
      %s39 = sphi 0, %s36
      %s40 = sphi 0, %s39
      %s56 = sphi 0, %s40
      %s60 = sphi 0, %s60
      %s62 = sphi 0, %s60
      %s63 = sphi 0, %s62
      %s77 = sphi 0, %s63
      %s81 = sphi 0, %s81
      %s83 = sphi 0, %s81
      %s84 = sphi 0, %s83
      %s98 = sphi 0, %s84
      %s106 = sphi 0, %s108
      %s109 = sphi 0, %s106
      %s110 = sphi 0, %s109
      %s126 = sphi 0, %s110
    $region4: #{tpu_custom_call.1} parent=1 // loop_header_branch
      %15 = sbr.rel (%p13) target = $region8
    $region5: #{tpu_custom_call.1} parent=1 // loop_body
      %s17 = ssub.s32 %s12, 1
      %s18 = ssub.s32 %s12, 2
      %s25 = sadd.s32 1, %s20
      %p26 = scmp.ge.s32.totalorder %s25, 4
      %s27 = scalar_select %p26, 0, %s25
      %s28 = sadd.s32 1, %s19
      %s29 = scalar_select %p26, %s28, %s19
      %p30 = scmp.ge.s32.totalorder %s29, 2
      %s31 = scalar_select %p30, 0, %s29
      %s32 = ssub.s32 %s19, %s31
      %s33 = ssub.s32 %s20, %s27
      %s34 = sor.u32 %s32, %s33
      %p35 = scmp.eq.s32.totalorder %s34, 0
      %s37 = sadd.s32 %s36, 1
      %s38 = scalar_select %p35, %s36, %s37
      %p41 = pneg %p35
      %p42 = scmp.eq.s32.totalorder %s12, 7
      %p43 = por %p41, %p42
      %p44 = scmp.ne.s32.totalorder %s36, %s39
      %p45 = scmp.eq.s32.totalorder %s12, 0
      %p46 = por %p44, %p45
      %p47 = scmp.ne.s32.totalorder %s36, %s39
      %p48 = scmp.eq.s32.totalorder %s17, 7
      %p49 = por %p47, %p48
      %p50 = scmp.ne.s32.totalorder %s39, %s40
      %p51 = scmp.eq.s32.totalorder %s17, 0
      %p52 = por %p50, %p51
      %p53 = scmp.ne.s32.totalorder %s39, %s40
      %p54 = scmp.eq.s32.totalorder %s18, 7
      %p55 = por %p53, %p54
      %p57 = scmp.ne.s32.totalorder %s40, %s56
      %p58 = scmp.eq.s32.totalorder %s18, 0
      %p59 = por %p57, %p58
      %s61 = sadd.s32 %s60, 1
      %p64 = scmp.eq.s32.totalorder %s12, 7
      %p65 = scmp.ne.s32.totalorder %s60, %s62
      %p66 = scmp.eq.s32.totalorder %s12, 0
      %p67 = por %p65, %p66
      %p68 = scmp.ne.s32.totalorder %s60, %s62
      %p69 = scmp.eq.s32.totalorder %s17, 7
      %p70 = por %p68, %p69
      %p71 = scmp.ne.s32.totalorder %s62, %s63
      %p72 = scmp.eq.s32.totalorder %s17, 0
      %p73 = por %p71, %p72
      %p74 = scmp.ne.s32.totalorder %s62, %s63
      %p75 = scmp.eq.s32.totalorder %s18, 7
      %p76 = por %p74, %p75
      %p78 = scmp.ne.s32.totalorder %s63, %s77
      %p79 = scmp.eq.s32.totalorder %s18, 0
      %p80 = por %p78, %p79
      %s82 = sadd.s32 %s81, 1
      %p85 = scmp.eq.s32.totalorder %s12, 7
      %p86 = scmp.ne.s32.totalorder %s81, %s83
      %p87 = scmp.eq.s32.totalorder %s12, 0
      %p88 = por %p86, %p87
      %p89 = scmp.ne.s32.totalorder %s81, %s83
      %p90 = scmp.eq.s32.totalorder %s17, 7
      %p91 = por %p89, %p90
      %p92 = scmp.ne.s32.totalorder %s83, %s84
      %p93 = scmp.eq.s32.totalorder %s17, 0
      %p94 = por %p92, %p93
      %p95 = scmp.ne.s32.totalorder %s83, %s84
      %p96 = scmp.eq.s32.totalorder %s18, 7
      %p97 = por %p95, %p96
      %p99 = scmp.ne.s32.totalorder %s84, %s98
      %p100 = scmp.eq.s32.totalorder %s18, 0
      %p101 = por %p99, %p100
      %s102 = ssub.s32 %s19, %s31
      %s103 = ssub.s32 %s20, %s27
      %s104 = sor.u32 %s102, %s103
      %p105 = scmp.eq.s32.totalorder %s104, 0
      %s107 = sadd.s32 %s106, 1
      %s108 = scalar_select %p105, %s106, %s107
      %p111 = pneg %p105
      %p112 = scmp.eq.s32.totalorder %s12, 7
      %p113 = por %p111, %p112
      %p114 = scmp.ne.s32.totalorder %s106, %s109
      %p115 = scmp.eq.s32.totalorder %s12, 0
      %p116 = por %p114, %p115
      %p117 = scmp.ne.s32.totalorder %s106, %s109
      %p118 = scmp.eq.s32.totalorder %s17, 7
      %p119 = por %p117, %p118
      %p120 = scmp.ne.s32.totalorder %s109, %s110
      %p121 = scmp.eq.s32.totalorder %s17, 0
      %p122 = por %p120, %p121
      %p123 = scmp.ne.s32.totalorder %s109, %s110
      %p124 = scmp.eq.s32.totalorder %s18, 7
      %p125 = por %p123, %p124
      %p127 = scmp.ne.s32.totalorder %s110, %s126
      %p128 = scmp.eq.s32.totalorder %s18, 0
      %p129 = por %p127, %p128
      %p130 = scmp.le.s32.totalorder 1, %s12
      %p131 = scmp.lt.s32.totalorder %s12, 9
      %p132 = pnand %p130, %p131
      %p133 = pneg %p132
      // Predicated region
      $region9: #{tpu_custom_call.1} parent=5 // pred_check
        _
      $region10: #{tpu_custom_call.1} parent=5 // pred_check_branch
        %135 = sbr.rel (%p132) target = $region12
      $region11: #{tpu_custom_call.1} parent=5 // pred_region
        %s136 = ssub.s32 %s12, 1
        // Predicated region
        $region13: #{tpu_custom_call.1} parent=11 // pred_check
          %p137 = pneg %p73
        $region14: #{tpu_custom_call.1} parent=11 // pred_check_branch
          %139 = sbr.rel (%p137) target = $region16
        $region15: #{tpu_custom_call.1} parent=11 // pred_region
          _
        $region16: #{tpu_custom_call.1} parent=11 // pred_fallthru
          _
        // Predicated region
        $region17: #{tpu_custom_call.1} parent=11 // pred_check
          %p140 = pneg %p94
        $region18: #{tpu_custom_call.1} parent=11 // pred_check_branch
          %142 = sbr.rel (%p140) target = $region20
        $region19: #{tpu_custom_call.1} parent=11 // pred_region
          _
        $region20: #{tpu_custom_call.1} parent=11 // pred_fallthru
          _
      $region12: #{tpu_custom_call.1} parent=5 // pred_fallthru
        _
      %p143 = scmp.lt.s32.totalorder %s12, 8
      // Predicated region
      $region21: #{tpu_custom_call.1} parent=5 // pred_check
        %p144 = pneg %p143
      $region22: #{tpu_custom_call.1} parent=5 // pred_check_branch
        %146 = sbr.rel (%p144) target = $region24
      $region23: #{tpu_custom_call.1} parent=5 // pred_region
        // Predicated region
        $region25: #{tpu_custom_call.1} parent=23 // pred_check
          %p147 = pneg %p46
        $region26: #{tpu_custom_call.1} parent=23 // pred_check_branch
          %149 = sbr.rel (%p147) target = $region28
        $region27: #{tpu_custom_call.1} parent=23 // pred_region
          %s150 = sand.u32 %s36, 1
          %s151 = scalar_lea.sflag [#allocation3], %s150
          %s152 = sand.u32 %s36, 1
          %s153 = smul.addr %s152, 4
          %s154 = scalar_lea.vmem [#allocation2], %s153
          %s156 = ssub.s32 64, 64
          %157 = vsyncadd %s151, %s156
          %s158 = smul.addr %s19, 4
          %s159 = sadd.s32 %s20, %s158
          %s160 = smul.addr %s159, 64
          %s161 = scalar_lea.hbm %s0, %s160
          %s163 = sshll.u32 %s154, 4
          %s164 = int_to_ptr.vmem [resolvable:$true] %s163
          %166 = dma.hbm_to_vmem [thread:$0]  %s161, 64, %s164, %s151
        $region28: #{tpu_custom_call.1} parent=23 // pred_fallthru
          _
      $region24: #{tpu_custom_call.1} parent=5 // pred_fallthru
        _
      %p167 = scmp.le.s32.totalorder 1, %s12
      %p168 = scmp.lt.s32.totalorder %s12, 9
      %p169 = pnand %p167, %p168
      %p170 = pneg %p169
      // Predicated region
      $region29: #{tpu_custom_call.1} parent=5 // pred_check
        _
      $region30: #{tpu_custom_call.1} parent=5 // pred_check_branch
        %172 = sbr.rel (%p169) target = $region32
      $region31: #{tpu_custom_call.1} parent=5 // pred_region
        %s173 = ssub.s32 %s12, 1
        %s174 = sand.u32 %s39, 1
        %s175 = scalar_lea.sflag [#allocation3], %s174
        %s176 = sand.u32 %s39, 1
        %s177 = smul.addr %s176, 4
        %s178 = scalar_lea.vmem [#allocation2], %s177
        // Predicated region
        $region33: #{tpu_custom_call.1} parent=31 // pred_check
          %p179 = pneg %p52
        $region34: #{tpu_custom_call.1} parent=31 // pred_check_branch
          %181 = sbr.rel (%p179) target = $region36
        $region35: #{tpu_custom_call.1} parent=31 // pred_region
          %182 = dma.done %s175, 64
        $region36: #{tpu_custom_call.1} parent=31 // pred_fallthru
          _
        %s183 = sand.u32 %s39, 1
        %s184 = scalar_lea.sflag [#allocation3], %s183
        %s185 = sand.u32 %s39, 1
        %s186 = smul.addr %s185, 4
        %s187 = scalar_lea.vmem [#allocation2], %s186
        %p188 = pneg %p52
        %p189 = pneg %p49
        %p190 = pneg %p73
        %p191 = pneg %p70
        %p192 = pneg %p94
        %p193 = pneg %p91
        %p194 = pneg %p122
        %p195 = pneg %p119
        %p196 = scmp.lt.s32.totalorder %s21, 1
        %s197 = scalar_select %p196, %s21, 1
        %p198 = scmp.lt.s32.totalorder %s22, 3
        %s199 = scalar_select %p198, %s22, 3
        %s200 = smul.addr %s197, 4
        %s201 = sadd.s32 %s199, %s200
        %s202 = smul.addr %s201, 8
        %s203 = scalar_lea.vmem %s3, %s202
        %p204 = scmp.lt.s32.totalorder %s21, 1
        %s205 = scalar_select %p204, %s21, 1
        %p206 = scmp.lt.s32.totalorder %s22, 3
        %s207 = scalar_select %p206, %s22, 3
        %s208 = smul.addr %s205, 4
        %s209 = sadd.s32 %s207, %s208
        %s210 = smul.addr %s209, 8
        %s211 = scalar_lea.vmem %s3, %s210
        %v212 = vld [vmem:[%s178] sm:$0xf]
        %v213 = vld [vmem:[%s1] sm:$0x3f]
        %215 = vset.pattern.permute.xlu0 0
        %216 = vperm.xlu0 %215, %v213
        %v217 = vpop.permute.xlu0 %216
        %v219 = vlaneseq
        %v220 = vshrl.u32 %v219, 7
        %v221 = vsub.s32 0, %v220
        %v222 = vrot.slane %v212, %v221
        %v223 = vmul.f32 %v217, %v222
        %v224 = vld [vmem:[%s2] sm:$0x3f]
        %226 = vset.pattern.permute.xlu0 0
        %227 = vperm.xlu0 %226, %v224
        %v228 = vpop.permute.xlu0 %227
        %v230 = vadd.f32 %v223, %v228
        %231 = vset.pattern.permute.xlu0 1
        %232 = vperm.xlu0 %231, %v213
        %v233 = vpop.permute.xlu0 %232
        %v235 = vlaneseq
        %v236 = vshrl.u32 %v235, 7
        %v237 = vsub.s32 1, %v236
        %v238 = vrot.slane %v212, %v237
        %v239 = vmul.f32 %v233, %v238
        %v240 = vadd.f32 %v230, %v239
        %241 = vset.pattern.permute.xlu0 2
        %242 = vperm.xlu0 %241, %v213
        %v243 = vpop.permute.xlu0 %242
        %v245 = vlaneseq
        %v246 = vshrl.u32 %v245, 7
        %v247 = vsub.s32 2, %v246
        %v248 = vrot.slane %v212, %v247
        %v249 = vmul.f32 %v243, %v248
        %v250 = vadd.f32 %v240, %v249
        %251 = vset.pattern.permute.xlu0 3
        %252 = vperm.xlu0 %251, %v213
        %v253 = vpop.permute.xlu0 %252
        %v255 = vlaneseq
        %v256 = vshrl.u32 %v255, 7
        %v257 = vsub.s32 3, %v256
        %v258 = vrot.slane %v212, %v257
        %v259 = vmul.f32 %v253, %v258
        %v260 = vadd.f32 %v250, %v259
        %261 = vst [vmem:[%s211] sm:$0x3f] %v260
        %p262 = scmp.lt.s32.totalorder %s21, 1
        %s263 = scalar_select %p262, %s21, 1
        %p264 = scmp.lt.s32.totalorder %s22, 3
        %s265 = scalar_select %p264, %s22, 3
        %s266 = smul.addr %s263, 4
        %s267 = sadd.s32 %s265, %s266
        %s268 = smul.addr %s267, 8
        %s269 = scalar_lea.vmem %s3, %s268
        // Predicated region
        $region37: #{tpu_custom_call.1} parent=31 // pred_check
          %p270 = pneg %p119
        $region38: #{tpu_custom_call.1} parent=31 // pred_check_branch
          %272 = sbr.rel (%p270) target = $region40
        $region39: #{tpu_custom_call.1} parent=31 // pred_region
          _
        $region40: #{tpu_custom_call.1} parent=31 // pred_fallthru
          _
      $region32: #{tpu_custom_call.1} parent=5 // pred_fallthru
        _
      %p273 = scmp.le.s32.totalorder 2, %s12
      // Predicated region
      $region41: #{tpu_custom_call.1} parent=5 // pred_check
        %p274 = pneg %p273
      $region42: #{tpu_custom_call.1} parent=5 // pred_check_branch
        %276 = sbr.rel (%p274) target = $region44
      $region43: #{tpu_custom_call.1} parent=5 // pred_region
        %s277 = ssub.s32 %s12, 2
        // Predicated region
        $region45: #{tpu_custom_call.1} parent=43 // pred_check
          %p278 = pneg %p125
        $region46: #{tpu_custom_call.1} parent=43 // pred_check_branch
          %280 = sbr.rel (%p278) target = $region48
        $region47: #{tpu_custom_call.1} parent=43 // pred_region
          %p281 = scmp.lt.s32.totalorder %s23, 1
          %s282 = scalar_select %p281, %s23, 1
          %p283 = scmp.lt.s32.totalorder %s24, 3
          %s284 = scalar_select %p283, %s24, 3
          %s285 = smul.addr %s282, 4
          %s286 = sadd.s32 %s284, %s285
          %s287 = smul.addr %s286, 8
          %s288 = scalar_lea.vmem %s3, %s287
        $region48: #{tpu_custom_call.1} parent=43 // pred_fallthru
          _
      $region44: #{tpu_custom_call.1} parent=5 // pred_fallthru
        _
    $region6: #{tpu_custom_call.1} parent=1 // loop_footer
      %s16 = sadd.s32 1, %s12
    $region7: #{tpu_custom_call.1} parent=1 // loop_footer_branch
      %11 = sbr.rel target = $region3
    $region8: #{tpu_custom_call.1} parent=1 // loop_exit
      _
    %289 = vsyncpa [#allocation3], 1
    %s290 = scalar_lea.sflag [#allocation3], 1
    %291 = vsyncpa %s290, 1

</llo_original>
